<compile_context>
chip_gen: v6e
topology: v6e:2x2x1
jax: 0.10.0
libtpu: 0.0.40
codegen_flags: <defaults>
</compile_context>

<pallas_src>
import functools

import jax
import jax.numpy as jnp
from jax.experimental import pallas as pl
from jax.experimental.pallas import tpu as pltpu


# ----------------------------------------------------------------------------- helpers
def _round_up(v, m):
    return (v + m - 1) // m * m


def _pick_tile(dim_padded, cap, step):
    """Largest multiple of `step` <= cap that exactly divides dim_padded.

    dim_padded is always a multiple of `step`, so this terminates (worst case t=step).
    """
    t = max(step, min(cap, dim_padded))
    t = (t // step) * step
    while dim_padded % t:
        t -= step
    return t


def _apply_act(acc, activate):
    if activate == "relu":
        return jnp.maximum(acc, 0.0)                   # VPU
    if activate == "lrelu":
        return jnp.where(acc >= 0.0, acc, 0.2 * acc)   # slope 0.2 == nn.LeakyReLU(0.2) in the spec
    if activate == "tanh":
        return jnp.tanh(acc)                           # EUP
    return acc                                         # activate=None -> plain linear


# ----------------------------------------------------------------------------- kernels
def _linear_kernel_1k(x_ref, w_ref, b_ref, o_ref, *, activate):
    """Whole K fits in one tile: no scratch, no init/finalize gating."""
    acc = jnp.dot(x_ref[...], w_ref[...], preferred_element_type=jnp.float32)
    o_ref[...] = _apply_act(acc + b_ref[...], activate).astype(o_ref.dtype)


def _linear_kernel_acc_out(x_ref, w_ref, b_ref, o_ref, *, activate):
    """K-grid > 1, f32 output: accumulate directly into the VMEM-resident o_ref."""
    k = pl.program_id(2)

    @pl.when(k == 0)
    def _init():
        o_ref[...] = jnp.zeros_like(o_ref)

    o_ref[...] += jnp.dot(x_ref[...], w_ref[...], preferred_element_type=jnp.float32)

    @pl.when(k == pl.num_programs(2) - 1)
    def _finalize():
        o_ref[...] = _apply_act(o_ref[...] + b_ref[...], activate)


def _linear_kernel_scratch(x_ref, w_ref, b_ref, o_ref, acc_ref, *, activate):
    """K-grid > 1, non-f32 (e.g. bf16) output: f32 scratch accumulator."""
    k = pl.program_id(2)

    @pl.when(k == 0)
    def _init():
        acc_ref[...] = jnp.zeros_like(acc_ref)

    acc_ref[...] += jnp.dot(x_ref[...], w_ref[...], preferred_element_type=jnp.float32)

    @pl.when(k == pl.num_programs(2) - 1)
    def _finalize():
        o_ref[...] = _apply_act(acc_ref[...] + b_ref[...], activate).astype(o_ref.dtype)


# ----------------------------------------------------------------------------- params
def init_linear_params(key, in_channel, out_channel, bias=True):
    """nn.Linear-style init.

    Weight is transposed to (Cin, Cout), cast to bf16 and zero-padded to
    128-multiples ONCE here, so the forward pass never touches/pads it again.
    Returns (params_dict, weight_f32_torch_layout, bias_f32) for reference math.
    """
    kw, kb = jax.random.split(key)
    bound = 1.0 / float(in_channel) ** 0.5
    weight = jax.random.uniform(kw, (out_channel, in_channel), jnp.float32, -bound, bound)
    if bias:
        b = jax.random.uniform(kb, (out_channel,), jnp.float32, -bound, bound)
    else:
        b = jnp.zeros((out_channel,), jnp.float32)

    cin_p = _round_up(in_channel, 128)
    cout_p = _round_up(out_channel, 128)
    w_t = weight.T.astype(jnp.bfloat16)                                     # (Cin, Cout)
    w_t = jnp.pad(w_t, ((0, cin_p - in_channel), (0, cout_p - out_channel)))
    b_p = jnp.pad(b.reshape(1, out_channel), ((0, 0), (0, cout_p - out_channel)))

    params = {
        "weight_t": w_t,        # (Cinp, Coutp) bf16, padded once
        "bias": b_p,            # (1, Coutp) f32, padded once
        "in_channel": in_channel,
        "out_channel": out_channel,
    }
    return params, weight, b


# ----------------------------------------------------------------------------- wrapper
def linear_forward(params, x, activate="relu", out_dtype=jnp.float32,
                   tile_caps=(512, 512, 1024)):
    """Pallas equivalent of Linear.forward.   x: (B, Cin) float32."""
    w_t = params["weight_t"]                  # (Cinp, Coutp) bf16 (padded at init)
    b2 = params["bias"]                       # (1, Coutp)    f32  (padded at init)
    Cin, Cout = params["in_channel"], params["out_channel"]
    B = x.shape[0]
    assert x.shape[1] == Cin
    Cinp, Coutp = w_t.shape
    out_dtype = jnp.dtype(out_dtype)
    out_bytes = out_dtype.itemsize

    # Tiles: as big as the caps allow while exactly dividing the padded dims.
    # Lanes multiple of 128; bf16 sublane pack of 16 on the second-minor dims.
    Bp = _round_up(B, 16)
    tm = _pick_tile(Bp, tile_caps[0], 16)
    tn = _pick_tile(Coutp, tile_caps[1], 128)
    tk = _pick_tile(Cinp, tile_caps[2], 128)

    # v7x megacore: if the parallel grid collapses to one point but Cout allows
    # splitting, shrink tn so both TensorCores get work.
    if (Bp // tm) * (Coutp // tn) < 2 and Coutp >= 256:
        tn = 128

    kgrid = Cinp // tk

    # Only x is padded per call (zero rows / zero K-columns contribute nothing).
    xb = x.astype(jnp.bfloat16)
    if (Bp, Cinp) != (B, Cin):
        xb = jnp.pad(xb, ((0, Bp - B), (0, Cinp - Cin)))

    # Actual HBM traffic: x re-read once per N-tile, W re-read once per M-tile.
    cost = pl.CostEstimate(
        flops=2 * Bp * Cinp * Coutp,
        transcendentals=(Bp * Coutp if activate == "tanh" else 0),
        bytes_accessed=(Bp * Cinp * 2 * (Coutp // tn)
                        + Cinp * Coutp * 2 * (Bp // tm)
                        + Bp * Coutp * out_bytes),
    )

    # Scoped-VMEM budget: double-buffered tiles + scratch + headroom.
    # >= 32 MiB so v5e's 16 MiB default never forces smaller tiles; <= 48 MiB
    # to stay comfortably inside v7x's 64 MiB physical VMEM.
    footprint = (2 * tm * tk * 2 + 2 * tk * tn * 2
                 + 2 * tm * tn * out_bytes + tm * tn * 4 + 2 * tn * 4)
    vmem_limit = int(min(48 << 20, max(32 << 20, 2 * footprint)))

    if kgrid == 1:
        grid = (Bp // tm, Coutp // tn)
        kernel = functools.partial(_linear_kernel_1k, activate=activate)
        in_specs = [
            pl.BlockSpec((tm, tk), lambda i, j: (i, 0)),    # x tile
            pl.BlockSpec((tk, tn), lambda i, j: (0, j)),    # W^T tile
            pl.BlockSpec((1, tn), lambda i, j: (0, j)),     # bias tile
        ]
        out_specs = pl.BlockSpec((tm, tn), lambda i, j: (i, j))
        scratch_shapes = []
        dims = ("parallel", "parallel")
    else:
        grid = (Bp // tm, Coutp // tn, kgrid)
        in_specs = [
            pl.BlockSpec((tm, tk), lambda i, j, k: (i, k)),
            pl.BlockSpec((tk, tn), lambda i, j, k: (k, j)),
            pl.BlockSpec((1, tn), lambda i, j, k: (0, j)),
        ]
        out_specs = pl.BlockSpec((tm, tn), lambda i, j, k: (i, j))
        dims = ("parallel", "parallel", "arbitrary")
        if out_dtype == jnp.dtype(jnp.float32):
            # Accumulate directly into the VMEM-resident output tile.
            kernel = functools.partial(_linear_kernel_acc_out, activate=activate)
            scratch_shapes = []
        else:
            kernel = functools.partial(_linear_kernel_scratch, activate=activate)
            scratch_shapes = [pltpu.VMEM((tm, tn), jnp.float32)]

    out = pl.pallas_call(
        kernel,
        out_shape=jax.ShapeDtypeStruct((Bp, Coutp), out_dtype),
        grid_spec=pltpu.PrefetchScalarGridSpec(
            num_scalar_prefetch=0,
            grid=grid,
            in_specs=in_specs,
            out_specs=out_specs,
            scratch_shapes=scratch_shapes,
        ),
        compiler_params=pltpu.CompilerParams(
            dimension_semantics=dims,
            vmem_limit_bytes=vmem_limit,
        ),
        cost_estimate=cost,
    )(xb, w_t, b2)

    if (Bp, Coutp) != (B, Cout):
        out = out[:B, :Cout]
    return out


# ----------------------------------------------------------------------------- reference
def _reference(x, weight_f32, bias_f32, activate):
    # Same bf16-operand / f32-accumulate arithmetic as the kernel.
    y = jnp.dot(x.astype(jnp.bfloat16), weight_f32.T.astype(jnp.bfloat16),
                preferred_element_type=jnp.float32) + bias_f32
    return _apply_act(y, activate)


# ----------------------------------------------------------------------------- test
if __name__ == "__main__":
    key = jax.random.PRNGKey(0)
    k_x, k_p, k_x2, k_p2 = jax.random.split(key, 4)

    # --- primary small-shape case (K-grid == 1 fast path) ---------------------
    B, Cin, Cout = 8, 32, 64
    x = jax.random.normal(k_x, (B, Cin), jnp.float32)
    params, w_f32, b_f32 = init_linear_params(k_p, Cin, Cout)

    for act in ("relu", "lrelu", "tanh", None):
        out = jax.block_until_ready(linear_forward(params, x, activate=act))
        assert out.shape == (B, Cout)
        ref = _reference(x, w_f32, b_f32, act)
        assert jnp.allclose(out, ref, atol=1e-2, rtol=1e-2), f"mismatch for act={act}"
        # Loose check against full-f32 PyTorch-style math.
        ref32 = _apply_act(x @ w_f32.T + b_f32, act)
        assert jnp.allclose(out, ref32, atol=5e-2, rtol=5e-2), f"f32 mismatch for act={act}"

    # --- exercise the K-grid > 1 accumulate-into-output path (f32 out) --------
    B2, Cin2, Cout2 = 16, 256, 128
    x2 = jax.random.normal(k_x2, (B2, Cin2), jnp.float32)
    params2, w2_f32, b2_f32 = init_linear_params(k_p2, Cin2, Cout2)
    out2 = jax.block_until_ready(
        linear_forward(params2, x2, activate="relu", tile_caps=(16, 128, 128)))
    ref2 = _reference(x2, w2_f32, b2_f32, "relu")
    assert jnp.allclose(out2, ref2, atol=1e-2, rtol=1e-2)

    # --- exercise the bf16-output scratch path ---------------------------------
    out3 = jax.block_until_ready(
        linear_forward(params2, x2, activate="relu", out_dtype=jnp.bfloat16,
                       tile_caps=(16, 128, 128)))
    assert out3.dtype == jnp.bfloat16
    assert jnp.allclose(out3.astype(jnp.float32), ref2, atol=5e-2, rtol=5e-2)

    print("KERNEL_OK")
</pallas_src>

<mosaic_0001>
module attributes {stable_mosaic.version = 11 : i64} {
  func.func @_linear_kernel_1k(%arg0: i32, %arg1: i32, %arg2: memref<16x128xbf16, #tpu.memory_space<vmem>>, %arg3: memref<128x128xbf16, #tpu.memory_space<vmem>>, %arg4: memref<1x128xf32, #tpu.memory_space<vmem>>, %arg5: memref<16x128xf32, #tpu.memory_space<vmem>>) attributes {dimension_semantics = [#tpu.dimension_semantics<parallel>, #tpu.dimension_semantics<parallel>], iteration_bounds = array<i64: 1, 1>, scalar_prefetch = 0 : i64, scratch_operands = 0 : i64, tpu.core_type = #tpu.core_type<tc>, window_params = [{transform_indices = @transform_0, window_bounds = array<i64: 16, 128>}, {transform_indices = @transform_1, window_bounds = array<i64: 128, 128>}, {transform_indices = @transform_2, window_bounds = array<i64: 1, 128>}, {transform_indices = @transform_3, window_bounds = array<i64: 16, 128>}]} {
    %c0 = arith.constant 0 : index
    %c0_0 = arith.constant 0 : index
    %0 = vector.load %arg2[%c0, %c0_0] : memref<16x128xbf16, #tpu.memory_space<vmem>>, vector<16x128xbf16>
    %c0_1 = arith.constant 0 : index
    %c0_2 = arith.constant 0 : index
    %1 = vector.load %arg3[%c0_1, %c0_2] : memref<128x128xbf16, #tpu.memory_space<vmem>>, vector<128x128xbf16>
    %cst = arith.constant dense<0.000000e+00> : vector<16x128xf32>
    %2 = tpu.matmul %0, %1, %cst {dimension_numbers = #tpu.dot_dimension_numbers<[1], [0], [0], [1], [0, 0, 1, 1], [], []>} : vector<16x128xbf16>, vector<128x128xbf16>, vector<16x128xf32> -> vector<16x128xf32>
    %c0_3 = arith.constant 0 : index
    %c0_4 = arith.constant 0 : index
    %3 = vector.load %arg4[%c0_3, %c0_4] : memref<1x128xf32, #tpu.memory_space<vmem>>, vector<1x128xf32>
    %4 = vector.broadcast %3 : vector<1x128xf32> to vector<16x128xf32>
    %5 = arith.addf %2, %4 : vector<16x128xf32>
    %cst_5 = arith.constant 0.000000e+00 : f32
    %6 = vector.broadcast %cst_5 : f32 to vector<16x128xf32>
    %7 = arith.maximumf %5, %6 : vector<16x128xf32>
    %c0_6 = arith.constant 0 : index
    %c0_7 = arith.constant 0 : index
    %8 = vector.load %arg5[%c0_6, %c0_7] : memref<16x128xf32, #tpu.memory_space<vmem>>, vector<16x128xf32>
    tpu.vector_store %arg5[%c0_6, %c0_7], %7 {strides = array<i32>} : memref<16x128xf32, #tpu.memory_space<vmem>>, vector<16x128xf32>,
    return
  }
  func.func @transform_0(%arg0: i32, %arg1: i32) -> (i32, i32) {
    %c0_i32 = arith.constant 0 : i32
    %c0_i32_0 = arith.constant 0 : i32
    return %arg0, %c0_i32 : i32, i32
  }
  func.func @transform_1(%arg0: i32, %arg1: i32) -> (i32, i32) {
    %c0_i32 = arith.constant 0 : i32
    %c0_i32_0 = arith.constant 0 : i32
    return %c0_i32, %arg1 : i32, i32
  }
  func.func @transform_2(%arg0: i32, %arg1: i32) -> (i32, i32) {
    %c0_i32 = arith.constant 0 : i32
    %c0_i32_0 = arith.constant 0 : i32
    return %c0_i32, %arg1 : i32, i32
  }
  func.func @transform_3(%arg0: i32, %arg1: i32) -> (i32, i32) {
    %c0_i32 = arith.constant 0 : i32
    return %arg0, %arg1 : i32, i32
  }
}

</mosaic_0001>

<llo_original>
// kernel: tpu_custom_call.1
$region0: #{tpu_custom_call.1}
  #allocation0 [shape = 'u32[]', space=smem, size = 0x4, offset = 0x4, fixed_abs, tag = 'smem constant byte address 0x4 - core index']
  #allocation1 [shape = 'u32[144,128]{1,0:T(1,128)}', space=vmem, size = 0x12000, scoped, tag = 'internal scratch']
  %s0 = inlined_call_operand.hbm [shape: bf16[16,128], index: 0, kind: input, shape index: {}]
  %s1 = inlined_call_operand.hbm [shape: bf16[128,128], index: 1, kind: input, shape index: {}]
  %s2 = inlined_call_operand.vmem [shape: f32[1,128], index: 2, kind: input, shape index: {}]
  %s3 = inlined_call_operand.hbm [shape: f32[16,128], index: 3, kind: output, shape index: {}]
  %s4 = sld [smem:[#allocation0]]
  $region30: #{tpu_custom_call.1} parent=0
    _
  %s6 = ssub.s32 1, %s4
  %s7 = scalar_select 0, %s6, %s4
  $region1: #{tpu_custom_call.1} parent=0
    #allocation2 [shape = 'u8[4096]{0}', space=vmem, size = 0x1000, scoped, tag = 'input window, operand 0, single buffered']
    #allocation3 [shape = 's32[1]{0}', space=sflag, size = 0x4, scoped, tag = 'scoped memory for tpu_custom_call.1']
    #allocation4 [shape = 's32[1]{0}', space=sflag, size = 0x4, scoped, tag = 'scoped memory for tpu_custom_call.1']
    #allocation5 [shape = 'u8[32768]{0}', space=vmem, size = 0x8000, scoped, tag = 'input window, operand 1, single buffered']
    #allocation6 [shape = 's32[1]{0}', space=sflag, size = 0x4, scoped, tag = 'scoped memory for tpu_custom_call.1']
    #allocation7 [shape = 'u8[8192]{0}', space=vmem, size = 0x2000, scoped, tag = 'output window, operand 0, single buffered']
    %8 = vsyncpa [#allocation3], 0
    %9 = vsyncpa [#allocation6], 0
    %10 = vsyncpa [#allocation4], 0
    // Predicated region
    $region2: #{tpu_custom_call.1} parent=1 // pred_check
      _
    $region3: #{tpu_custom_call.1} parent=1 // pred_check_branch
      %12 = sbr.rel (0) target = $region5
    $region4: #{tpu_custom_call.1} parent=1 // pred_region
      %s14 = ssub.s32 128, 128
      %15 = vsyncadd [#allocation3], %s14
      %s16 = sshll.u32 [#allocation2], 4
      %s17 = int_to_ptr.vmem [resolvable:$true] %s16
      %22 = dma.hbm_to_vmem [thread:$0]  %s0, 128, %s17, [#allocation3], 64, 64, 4
    $region5: #{tpu_custom_call.1} parent=1 // pred_fallthru
      _
    // Predicated region
    $region6: #{tpu_custom_call.1} parent=1 // pred_check
      _
    $region7: #{tpu_custom_call.1} parent=1 // pred_check_branch
      %24 = sbr.rel (0) target = $region9
    $region8: #{tpu_custom_call.1} parent=1 // pred_region
      %s26 = ssub.s32 1024, 1024
      %27 = vsyncadd [#allocation6], %s26
      %s28 = sshll.u32 [#allocation5], 4
      %s29 = int_to_ptr.vmem [resolvable:$true] %s28
      %34 = dma.hbm_to_vmem [thread:$0]  %s1, 1024, %s29, [#allocation6], 64, 64, 4
    $region9: #{tpu_custom_call.1} parent=1 // pred_fallthru
      _
    // Predicated region
    $region10: #{tpu_custom_call.1} parent=1 // pred_check
      _
    $region11: #{tpu_custom_call.1} parent=1 // pred_check_branch
      %36 = sbr.rel (0) target = $region13
    $region12: #{tpu_custom_call.1} parent=1 // pred_region
      _
    $region13: #{tpu_custom_call.1} parent=1 // pred_fallthru
      _
    // Predicated region
    $region14: #{tpu_custom_call.1} parent=1 // pred_check
      _
    $region15: #{tpu_custom_call.1} parent=1 // pred_check_branch
      %38 = sbr.rel (0) target = $region17
    $region16: #{tpu_custom_call.1} parent=1 // pred_region
      %39 = dma.done [#allocation3], 128
    $region17: #{tpu_custom_call.1} parent=1 // pred_fallthru
      _
    // Predicated region
    $region18: #{tpu_custom_call.1} parent=1 // pred_check
      _
    $region19: #{tpu_custom_call.1} parent=1 // pred_check_branch
      %41 = sbr.rel (0) target = $region21
    $region20: #{tpu_custom_call.1} parent=1 // pred_region
      %42 = dma.done [#allocation6], 1024
    $region21: #{tpu_custom_call.1} parent=1 // pred_fallthru
      _
    %v44 = vld [vmem:[#allocation2] sm:$0xf]
    %v45 = vld [vmem:[#allocation2 + $0x4] sm:$0xf]
    %v46 = vld [vmem:[#allocation5] sm:$0xf]
    %v47 = vld [vmem:[#allocation5 + $0x4] sm:$0xf]
    %v48 = vld [vmem:[#allocation5 + $0x8] sm:$0xf]
    %v49 = vld [vmem:[#allocation5 + $0xc] sm:$0xf]
    %v50 = vld [vmem:[#allocation5 + $0x10] sm:$0xf]
    %v51 = vld [vmem:[#allocation5 + $0x14] sm:$0xf]
    %v52 = vld [vmem:[#allocation5 + $0x18] sm:$0xf]
    %v53 = vld [vmem:[#allocation5 + $0x1c] sm:$0xf]
    %v54 = vld [vmem:[#allocation5 + $0x20] sm:$0xf]
    %v55 = vld [vmem:[#allocation5 + $0x24] sm:$0xf]
    %v56 = vld [vmem:[#allocation5 + $0x28] sm:$0xf]
    %v57 = vld [vmem:[#allocation5 + $0x2c] sm:$0xf]
    %v58 = vld [vmem:[#allocation5 + $0x30] sm:$0xf]
    %v59 = vld [vmem:[#allocation5 + $0x34] sm:$0xf]
    %v60 = vld [vmem:[#allocation5 + $0x38] sm:$0xf]
    %v61 = vld [vmem:[#allocation5 + $0x3c] sm:$0xf]
    %v62 = vld [vmem:[%s2] sm:$0x1]
    %v64 = vlaneseq
    %v65 = vshrl.u32 %v64, 7
    %v66 = vsub.s32 0, %v65
    %v67 = vrot.slane %v62, %v66
    %v71 = vunpack.c.l.b16 %v44
    %v72 = vunpack.c.l.b16 %v45
    %v73 = vpack.c.b16 %v72, %v71
    %v91 = vunpack.c.l.b16 %v46
    %v92 = vunpack.c.l.b16 %v47
    %v93 = vunpack.c.l.b16 %v48
    %v94 = vunpack.c.l.b16 %v49
    %v95 = vunpack.c.l.b16 %v50
    %v96 = vunpack.c.l.b16 %v51
    %v97 = vunpack.c.l.b16 %v52
    %v98 = vunpack.c.l.b16 %v53
    %v99 = vunpack.c.l.b16 %v54
    %v100 = vunpack.c.l.b16 %v55
    %v101 = vunpack.c.l.b16 %v56
    %v102 = vunpack.c.l.b16 %v57
    %v103 = vunpack.c.l.b16 %v58
    %v104 = vunpack.c.l.b16 %v59
    %v105 = vunpack.c.l.b16 %v60
    %v106 = vunpack.c.l.b16 %v61
    %v107 = vpack.c.b16 %v92, %v91
    %v108 = vpack.c.b16 %v94, %v93
    %v109 = vpack.c.b16 %v96, %v95
    %v110 = vpack.c.b16 %v98, %v97
    %v111 = vpack.c.b16 %v100, %v99
    %v112 = vpack.c.b16 %v102, %v101
    %v113 = vpack.c.b16 %v104, %v103
    %v114 = vpack.c.b16 %v106, %v105
    %123 = vmatprep.subr.bf16.mxu0 0
    %124 = vmatpush1.bf16.msra.mxu0 %v114
    %125 = vmatprep.subr.bf16.mxu0 0
    %126 = vmatpush1.bf16.msra.mxu0 %v113
    %127 = vmatprep.subr.bf16.mxu0 0
    %128 = vmatpush1.bf16.msra.mxu0 %v112
    %129 = vmatprep.subr.bf16.mxu0 0
    %130 = vmatpush1.bf16.msra.mxu0 %v111
    %131 = vmatprep.subr.bf16.mxu0 0
    %132 = vmatpush1.bf16.msra.mxu0 %v110
    %133 = vmatprep.subr.bf16.mxu0 0
    %134 = vmatpush1.bf16.msra.mxu0 %v109
    %135 = vmatprep.subr.bf16.mxu0 0
    %136 = vmatpush1.bf16.msra.mxu0 %v108
    %137 = vmatprep.subr.bf16.mxu0 0
    %138 = vmatpush1.bf16.msra.mxu0 %v107
    %139 = vmatprep.subr.bf16.mxu0 0
    %140 = vmatpush2.bf16.msra.mxu0 0
    %141 = vmatprep.subr.bf16.mxu0 0
    %142 = vmatpush2.bf16.msra.mxu0 0
    %143 = vmatprep.subr.bf16.mxu0 0
    %144 = vmatpush2.bf16.msra.mxu0 0
    %145 = vmatprep.subr.bf16.mxu0 0
    %146 = vmatpush2.bf16.msra.mxu0 0
    %147 = vmatprep.subr.bf16.mxu0 0
    %148 = vmatpush2.bf16.msra.mxu0 0
    %149 = vmatprep.subr.bf16.mxu0 0
    %150 = vmatpush2.bf16.msra.mxu0 0
    %151 = vmatprep.subr.bf16.mxu0 0
    %152 = vmatpush2.bf16.msra.mxu0 0
    %153 = vmatprep.subr.bf16.mxu0 0
    %154 = vmatpush2.bf16.msra.mxu0 0
    %155 = vmatprep.mubr.bf16.mxu0 0
    %156 = vmatmul.mubr.bf16.gmra.mxu0 %v73
    %v157 = vpop.f32.mrf.mxu0
    %v158 = vadd.f32 %v67, %v157
    %v159 = vpop.f32.mrf.mxu0
    %v160 = vpop.f32.mrf.mxu0
    %v161 = vadd.f32 %v67, %v160
    %v162 = vpop.f32.mrf.mxu0
    %163 = vdwg.mxu0
    %v164 = vmax.f32 %v158, 0.0
    %v165 = vmax.f32 %v161, 0.0
    %166 = vst [vmem:[#allocation7] sm:$0xff] %v164
    %167 = vst [vmem:[#allocation7 + $0x8] sm:$0xff] %v165
    // Predicated region
    $region22: #{tpu_custom_call.1} parent=1 // pred_check
      _
    $region23: #{tpu_custom_call.1} parent=1 // pred_check_branch
      %169 = sbr.rel (0) target = $region25
    $region24: #{tpu_custom_call.1} parent=1 // pred_region
      %s171 = ssub.s32 256, 256
      %172 = vsyncadd [#allocation4], %s171
      %s173 = sshll.u32 [#allocation7], 4
      %s174 = int_to_ptr.vmem [resolvable:$true] %s173
      %179 = dma.vmem_to_hbm [thread:$0]  %s174, 256, %s3, [#allocation4], 128, 128, 8
    $region25: #{tpu_custom_call.1} parent=1 // pred_fallthru
      _
    // Predicated region
    $region26: #{tpu_custom_call.1} parent=1 // pred_check
      _
    $region27: #{tpu_custom_call.1} parent=1 // pred_check_branch
      %181 = sbr.rel (0) target = $region29
    $region28: #{tpu_custom_call.1} parent=1 // pred_region
      %182 = dma.done [#allocation4], 256
    $region29: #{tpu_custom_call.1} parent=1 // pred_fallthru
      _
    %183 = vsyncpa [#allocation3], 1
    %184 = vsyncpa [#allocation6], 1
    %185 = vsyncpa [#allocation4], 1

</llo_original>
